<compile_context>
chip_gen: v7x
topology: tpu7x:2x2x1
jax: 0.10.0
libtpu: 0.0.40
codegen_flags: <defaults>
</compile_context>

<pallas_src>
import functools

import jax
import jax.numpy as jnp
from jax.experimental import pallas as pl
from jax.experimental.pallas import tpu as pltpu

LANES = 128
# 8192 rows x 128 lanes x 4 B = 4 MiB per f32 input block.
MAX_BLOCK_ROWS = 8192
# Leading "parallel" grid axis: v7x has 2 TensorCores; on v5e/v6e this is just a
# size-2 sequential outer loop.
NUM_CORES = 2


def _elementwise_terms(x, y):
    # Numerically stable BCE-with-logits (same formula PyTorch uses), with
    # x = logits (`true` in the PyTorch call) and y = targets (`pred`).
    bce = jnp.maximum(x, 0.0) - x * y + jnp.log1p(jnp.exp(-jnp.abs(x)))
    sq = (x - y) * (x - y)
    return bce, sq


def _bce_dice_kernel(x_ref, y_ref, bce_out_ref, sq_out_ref, *,
                     rows, block_rows, inner, num_full, total_blocks):
    c = pl.program_id(0)          # core (parallel) axis
    j = pl.program_id(1)          # sequential reduction axis

    # The per-core output block doubles as a vector accumulator: its block index
    # is constant across j, so it stays resident in VMEM for the whole loop.
    @pl.when(j == 0)
    def _init():
        bce_out_ref[...] = jnp.zeros_like(bce_out_ref)
        sq_out_ref[...] = jnp.zeros_like(sq_out_ref)

    g = c * inner + j             # global block index (may point past the data)

    def accumulate(masked):
        x = x_ref[...].astype(jnp.float32)
        y = y_ref[...].astype(jnp.float32)
        bce, sq = _elementwise_terms(x, y)
        if masked:
            # Edge blocks only: rows past the end of the data hold garbage in
            # VMEM; select (not multiply) so NaN/Inf garbage cannot leak in.
            limit = rows - g * block_rows           # <= 0 for phantom blocks
            row_ids = jax.lax.broadcasted_iota(jnp.int32, x.shape, 0)
            valid = row_ids < limit
            bce = jnp.where(valid, bce, 0.0)
            sq = jnp.where(valid, sq, 0.0)
        # Sublane-axis reduction stays in vregs (pure VPU adds); the single
        # cross-lane reduce happens once, in the wrapper, on (cores, 128).
        bce_out_ref[...] += jnp.sum(bce, axis=0, keepdims=True)
        sq_out_ref[...] += jnp.sum(sq, axis=0, keepdims=True)

    if total_blocks > num_full:   # static: some blocks touch ragged/phantom rows
        is_full = g < num_full

        @pl.when(is_full)
        def _full():
            accumulate(False)

        @pl.when(jnp.logical_not(is_full))
        def _edge():
            accumulate(True)
    else:                         # static: every block is fully valid
        accumulate(False)


def bce_dice_loss(true, pred):
    assert true.shape == pred.shape
    n = int(true.size)
    x = true.reshape(-1)
    y = pred.reshape(-1)

    rows = n // LANES
    tail = n - rows * LANES

    # Sub-128 tail handled with a tiny jnp expression (at most 127 elements).
    if tail:
        xt = x[rows * LANES:].astype(jnp.float32)
        yt = y[rows * LANES:].astype(jnp.float32)
        bce_t, sq_t = _elementwise_terms(xt, yt)
        tail_bce = jnp.sum(bce_t)
        tail_sq = jnp.sum(sq_t)
    else:
        tail_bce = jnp.float32(0.0)
        tail_sq = jnp.float32(0.0)

    if rows == 0:
        total_bce, total_sq = tail_bce, tail_sq
    else:
        # Lane-dense (rows, 128) view of the flat data.  When n is a multiple of
        # 128 (the common case for NCHW tensors) this is a free layout-preserving
        # reshape -- no padded copy of either input is ever materialized.
        # TODO(synk): for non-128-divisible n, XLA materializes the prefix slice
        # once; still far cheaper than padding both full arrays.
        xm = (x if tail == 0 else x[:rows * LANES]).reshape(rows, LANES)
        ym = (y if tail == 0 else y[:rows * LANES]).reshape(rows, LANES)

        block_rows = min(MAX_BLOCK_ROWS, rows)   # == rows (full dim) when small
        num_blocks = pl.cdiv(rows, block_rows)
        ncores = NUM_CORES if num_blocks >= NUM_CORES else 1
        inner = pl.cdiv(num_blocks, ncores)
        total_blocks = ncores * inner
        num_full = rows // block_rows            # blocks with no invalid rows

        # Clamp phantom block indices (odd num_blocks split over 2 cores) onto
        # the last real block; the kernel masks their contribution to zero.
        def in_map(c, j):
            return (jnp.minimum(c * inner + j, num_blocks - 1), 0)

        kernel = functools.partial(
            _bce_dice_kernel, rows=rows, block_rows=block_rows, inner=inner,
            num_full=num_full, total_blocks=total_blocks)

        itemsize = xm.dtype.itemsize
        cost = pl.CostEstimate(
            flops=10 * rows * LANES,
            transcendentals=2 * rows * LANES,
            bytes_accessed=2 * rows * LANES * itemsize)

        bce_part, sq_part = pl.pallas_call(
            kernel,
            out_shape=(
                jax.ShapeDtypeStruct((ncores, 1, LANES), jnp.float32),
                jax.ShapeDtypeStruct((ncores, 1, LANES), jnp.float32),
            ),
            grid_spec=pltpu.PrefetchScalarGridSpec(
                num_scalar_prefetch=0,
                grid=(ncores, inner),
                in_specs=[
                    pl.BlockSpec((block_rows, LANES), in_map),
                    pl.BlockSpec((block_rows, LANES), in_map),
                ],
                out_specs=[
                    pl.BlockSpec((None, 1, LANES), lambda c, j: (c, 0, 0)),
                    pl.BlockSpec((None, 1, LANES), lambda c, j: (c, 0, 0)),
                ],
            ),
            compiler_params=pltpu.CompilerParams(
                dimension_semantics=("parallel", "arbitrary"),
                vmem_limit_bytes=32 * 1024 * 1024),
            cost_estimate=cost,
        )(xm, ym)

        total_bce = jnp.sum(bce_part) + tail_bce
        total_sq = jnp.sum(sq_part) + tail_sq

    # loss = bce_mean + (1 - dice_coef) = (sum(bce) + sum((true-pred)^2)) / n
    return (total_bce + total_sq) * jnp.float32(1.0 / n)


def _reference(true, pred):
    x = true.reshape(-1).astype(jnp.float32)
    y = pred.reshape(-1).astype(jnp.float32)
    bce = jnp.mean(jnp.maximum(x, 0.0) - x * y + jnp.log1p(jnp.exp(-jnp.abs(x))))
    dice_coef = jnp.mean(1.0 - (x - y) ** 2)
    return bce + (1.0 - dice_coef)


if __name__ == "__main__":
    key = jax.random.PRNGKey(0)
    k1, k2, k3, k4 = jax.random.split(key, 4)

    # NCHW, small shapes implied by the module: batch=2, channels=4, spatial=16.
    true = jax.random.normal(k1, (2, 4, 16, 16), dtype=jnp.float32)   # logits
    pred = jax.random.uniform(k2, (2, 4, 16, 16), dtype=jnp.float32)  # targets
    loss = bce_dice_loss(true, pred)
    jax.block_until_ready(loss)
    ref = _reference(true, pred)
    assert jnp.allclose(loss, ref, atol=1e-5, rtol=1e-5), (loss, ref)

    # Larger non-aligned shape: exercises the multi-block / dual-core split,
    # the ragged-block masked path and the <128-element tail handling.
    true2 = jax.random.normal(k3, (1, 3, 700, 500), dtype=jnp.float32)
    pred2 = jax.random.uniform(k4, (1, 3, 700, 500), dtype=jnp.float32)
    loss2 = bce_dice_loss(true2, pred2)
    jax.block_until_ready(loss2)
    ref2 = _reference(true2, pred2)
    assert jnp.allclose(loss2, ref2, atol=1e-4, rtol=1e-4), (loss2, ref2)

    print("KERNEL_OK")
</pallas_src>

<mosaic_0001>
module attributes {stable_mosaic.version = 11 : i64} {
  func.func @_bce_dice_kernel(%arg0: i32, %arg1: i32, %arg2: memref<16x128xf32, #tpu.memory_space<vmem>>, %arg3: memref<16x128xf32, #tpu.memory_space<vmem>>, %arg4: memref<1x1x128xf32, #tpu.memory_space<vmem>>, %arg5: memref<1x1x128xf32, #tpu.memory_space<vmem>>) attributes {dimension_semantics = [#tpu.dimension_semantics<parallel>, #tpu.dimension_semantics<arbitrary>], iteration_bounds = array<i64: 1, 1>, scalar_prefetch = 0 : i64, scratch_operands = 0 : i64, tpu.core_type = #tpu.core_type<tc>, window_params = [{transform_indices = @transform_0, window_bounds = array<i64: 16, 128>}, {transform_indices = @transform_1, window_bounds = array<i64: 16, 128>}, {transform_indices = @transform_2, window_bounds = array<i64: 1, 1, 128>}, {transform_indices = @transform_3, window_bounds = array<i64: 1, 1, 128>}]} {
    %c0_i32 = arith.constant 0 : i32
    %0 = arith.cmpi eq, %arg1, %c0_i32 : i32
    %1 = arith.extui %0 : i1 to i32
    %c0_i32_0 = arith.constant 0 : i32
    %2 = arith.cmpi ne, %1, %c0_i32_0 : i32
    scf.if %2 {
      %cst_19 = arith.constant 0.000000e+00 : f32
      %34 = vector.broadcast %cst_19 : f32 to vector<1x128xf32>
      %c0_20 = arith.constant 0 : index
      %c0_21 = arith.constant 0 : index
      %c0_22 = arith.constant 0 : index
      %35 = vector.load %arg4[%c0_20, %c0_21, %c0_22] : memref<1x1x128xf32, #tpu.memory_space<vmem>>, vector<1x1x128xf32>
      %36 = vector.shape_cast %35 : vector<1x1x128xf32> to vector<1x128xf32>
      %37 = vector.shape_cast %34 : vector<1x128xf32> to vector<1x1x128xf32>
      tpu.vector_store %arg4[%c0_20, %c0_21, %c0_22], %37 {strides = array<i32>} : memref<1x1x128xf32, #tpu.memory_space<vmem>>, vector<1x1x128xf32>,
      %cst_23 = arith.constant 0.000000e+00 : f32
      %38 = vector.broadcast %cst_23 : f32 to vector<1x128xf32>
      %c0_24 = arith.constant 0 : index
      %c0_25 = arith.constant 0 : index
      %c0_26 = arith.constant 0 : index
      %39 = vector.load %arg5[%c0_24, %c0_25, %c0_26] : memref<1x1x128xf32, #tpu.memory_space<vmem>>, vector<1x1x128xf32>
      %40 = vector.shape_cast %39 : vector<1x1x128xf32> to vector<1x128xf32>
      %41 = vector.shape_cast %38 : vector<1x128xf32> to vector<1x1x128xf32>
      tpu.vector_store %arg5[%c0_24, %c0_25, %c0_26], %41 {strides = array<i32>} : memref<1x1x128xf32, #tpu.memory_space<vmem>>, vector<1x1x128xf32>,
    } else {
    }
    %c0 = arith.constant 0 : index
    %c0_1 = arith.constant 0 : index
    %3 = vector.load %arg2[%c0, %c0_1] : memref<16x128xf32, #tpu.memory_space<vmem>>, vector<16x128xf32>
    %c0_2 = arith.constant 0 : index
    %c0_3 = arith.constant 0 : index
    %4 = vector.load %arg3[%c0_2, %c0_3] : memref<16x128xf32, #tpu.memory_space<vmem>>, vector<16x128xf32>
    %cst = arith.constant 0.000000e+00 : f32
    %5 = vector.broadcast %cst : f32 to vector<16x128xf32>
    %6 = arith.maximumf %3, %5 : vector<16x128xf32>
    %7 = arith.mulf %3, %4 : vector<16x128xf32>
    %8 = arith.subf %6, %7 : vector<16x128xf32>
    %9 = math.absf %3 : vector<16x128xf32>
    %cst_4 = arith.constant 0.000000e+00 : f32
    %10 = vector.broadcast %cst_4 : f32 to vector<16x128xf32>
    %11 = arith.subf %10, %9 : vector<16x128xf32>
    %12 = math.exp %11 : vector<16x128xf32>
    %13 = math.log1p %12 : vector<16x128xf32>
    %14 = arith.addf %8, %13 : vector<16x128xf32>
    %15 = arith.subf %3, %4 : vector<16x128xf32>
    %16 = arith.subf %3, %4 : vector<16x128xf32>
    %17 = arith.mulf %15, %16 : vector<16x128xf32>
    %c0_5 = arith.constant 0 : index
    %c0_6 = arith.constant 0 : index
    %c0_7 = arith.constant 0 : index
    %18 = vector.load %arg4[%c0_5, %c0_6, %c0_7] : memref<1x1x128xf32, #tpu.memory_space<vmem>>, vector<1x1x128xf32>
    %19 = vector.shape_cast %18 : vector<1x1x128xf32> to vector<1x128xf32>
    %cst_8 = arith.constant dense<0.000000e+00> : vector<128xf32>
    %20 = vector.multi_reduction <add>, %14, %cst_8 [0] : vector<16x128xf32> to vector<128xf32>
    %21 = vector.shape_cast %20 : vector<128xf32> to vector<1x128xf32>
    %22 = arith.addf %19, %21 : vector<1x128xf32>
    %c0_9 = arith.constant 0 : index
    %c0_10 = arith.constant 0 : index
    %c0_11 = arith.constant 0 : index
    %23 = vector.load %arg4[%c0_9, %c0_10, %c0_11] : memref<1x1x128xf32, #tpu.memory_space<vmem>>, vector<1x1x128xf32>
    %24 = vector.shape_cast %23 : vector<1x1x128xf32> to vector<1x128xf32>
    %25 = vector.shape_cast %22 : vector<1x128xf32> to vector<1x1x128xf32>
    tpu.vector_store %arg4[%c0_9, %c0_10, %c0_11], %25 {strides = array<i32>} : memref<1x1x128xf32, #tpu.memory_space<vmem>>, vector<1x1x128xf32>,
    %c0_12 = arith.constant 0 : index
    %c0_13 = arith.constant 0 : index
    %c0_14 = arith.constant 0 : index
    %26 = vector.load %arg5[%c0_12, %c0_13, %c0_14] : memref<1x1x128xf32, #tpu.memory_space<vmem>>, vector<1x1x128xf32>
    %27 = vector.shape_cast %26 : vector<1x1x128xf32> to vector<1x128xf32>
    %cst_15 = arith.constant dense<0.000000e+00> : vector<128xf32>
    %28 = vector.multi_reduction <add>, %17, %cst_15 [0] : vector<16x128xf32> to vector<128xf32>
    %29 = vector.shape_cast %28 : vector<128xf32> to vector<1x128xf32>
    %30 = arith.addf %27, %29 : vector<1x128xf32>
    %c0_16 = arith.constant 0 : index
    %c0_17 = arith.constant 0 : index
    %c0_18 = arith.constant 0 : index
    %31 = vector.load %arg5[%c0_16, %c0_17, %c0_18] : memref<1x1x128xf32, #tpu.memory_space<vmem>>, vector<1x1x128xf32>
    %32 = vector.shape_cast %31 : vector<1x1x128xf32> to vector<1x128xf32>
    %33 = vector.shape_cast %30 : vector<1x128xf32> to vector<1x1x128xf32>
    tpu.vector_store %arg5[%c0_16, %c0_17, %c0_18], %33 {strides = array<i32>} : memref<1x1x128xf32, #tpu.memory_space<vmem>>, vector<1x1x128xf32>,
    return
  }
  func.func @transform_0(%arg0: i32, %arg1: i32) -> (i32, i32) {
    %c1_i32 = arith.constant 1 : i32
    %0 = arith.muli %arg0, %c1_i32 : i32
    %1 = arith.addi %0, %arg1 : i32
    %c0_i32 = arith.constant 0 : i32
    %2 = arith.minsi %1, %c0_i32 : i32
    %c0_i32_0 = arith.constant 0 : i32
    %c0_i32_1 = arith.constant 0 : i32
    return %2, %c0_i32_0 : i32, i32
  }
  func.func @transform_1(%arg0: i32, %arg1: i32) -> (i32, i32) {
    %c1_i32 = arith.constant 1 : i32
    %0 = arith.muli %arg0, %c1_i32 : i32
    %1 = arith.addi %0, %arg1 : i32
    %c0_i32 = arith.constant 0 : i32
    %2 = arith.minsi %1, %c0_i32 : i32
    %c0_i32_0 = arith.constant 0 : i32
    %c0_i32_1 = arith.constant 0 : i32
    return %2, %c0_i32_0 : i32, i32
  }
  func.func @transform_2(%arg0: i32, %arg1: i32) -> (i32, i32, i32) {
    %c0_i32 = arith.constant 0 : i32
    %c0_i32_0 = arith.constant 0 : i32
    %c0_i32_1 = arith.constant 0 : i32
    return %arg0, %c0_i32, %c0_i32_0 : i32, i32, i32
  }
  func.func @transform_3(%arg0: i32, %arg1: i32) -> (i32, i32, i32) {
    %c0_i32 = arith.constant 0 : i32
    %c0_i32_0 = arith.constant 0 : i32
    %c0_i32_1 = arith.constant 0 : i32
    return %arg0, %c0_i32, %c0_i32_0 : i32, i32, i32
  }
}

</mosaic_0001>

<llo_original>
// kernel: tpu_custom_call.1
$region0: #{tpu_custom_call.1}
  #allocation0 [shape = 'u32[]', space=smem, size = 0x4, offset = 0x4, fixed_abs, tag = 'smem constant byte address 0x4 - core index']
  #allocation1 [shape = 'u32[144,128]{1,0:T(1,128)}', space=vmem, size = 0x12000, scoped, tag = 'internal scratch']
  %s0 = inlined_call_operand.hbm [shape: f32[16,128], index: 0, kind: input, shape index: {}]
  %s1 = inlined_call_operand.hbm [shape: f32[16,128], index: 1, kind: input, shape index: {}]
  %s2 = inlined_call_operand.hbm [shape: f32[1,1,128], index: 2, kind: output, shape index: {0}]
  %s3 = inlined_call_operand.hbm [shape: f32[1,1,128], index: 3, kind: output, shape index: {1}]
  %4 = xla_tuple %s2, %s3
  %s5 = sld [smem:[#allocation0]]
  $region38: #{tpu_custom_call.1} parent=0
    _
  %s7 = ssub.s32 1, %s5
  %s8 = scalar_select 0, %s7, %s5
  $region1: #{tpu_custom_call.1} parent=0
    #allocation2 [shape = 'u8[8192]{0}', space=vmem, size = 0x2000, scoped, tag = 'input window, operand 0, single buffered']
    #allocation3 [shape = 's32[1]{0}', space=sflag, size = 0x4, scoped, tag = 'scoped memory for tpu_custom_call.1']
    #allocation4 [shape = 's32[1]{0}', space=sflag, size = 0x4, scoped, tag = 'scoped memory for tpu_custom_call.1']
    #allocation5 [shape = 'u8[8192]{0}', space=vmem, size = 0x2000, scoped, tag = 'input window, operand 1, single buffered']
    #allocation6 [shape = 's32[1]{0}', space=sflag, size = 0x4, scoped, tag = 'scoped memory for tpu_custom_call.1']
    #allocation7 [shape = 'u8[512]{0}', space=vmem, size = 0x400, scoped, tag = 'output window, operand 0, single buffered']
    #allocation8 [shape = 'u8[512]{0}', space=vmem, size = 0x400, scoped, tag = 'output window, operand 1, single buffered']
    #allocation9 [shape = 's32[1]{0}', space=sflag, size = 0x4, scoped, tag = 'scoped memory for tpu_custom_call.1']
    %9 = vsyncpa [#allocation3], 0
    %10 = vsyncpa [#allocation6], 0
    %11 = vsyncpa [#allocation4], 0
    %12 = vsyncpa [#allocation9], 0
    // Predicated region
    $region2: #{tpu_custom_call.1} parent=1 // pred_check
      _
    $region3: #{tpu_custom_call.1} parent=1 // pred_check_branch
      %14 = sbr.rel (0) target = $region5
    $region4: #{tpu_custom_call.1} parent=1 // pred_region
      %s15 = sadd.s32 0, 0
      %p16 = scmp.lt.s32.totalorder %s15, 0
      %s17 = scalar_select %p16, %s15, 0
      %s18 = smul.u32 2, %s17
      %s20 = ssub.s32 256, 256
      %21 = vsyncadd [#allocation3], %s20
      %s22 = smul.addr %s18, 128
      %s23 = scalar_lea.hbm %s0, %s22
      %s24 = sshll.u32 [#allocation2], 4
      %s25 = int_to_ptr.vmem [resolvable:$true] %s24
      %30 = dma.hbm_to_vmem [thread:$0]  %s23, 256, %s25, [#allocation3], 128, 128, 8
    $region5: #{tpu_custom_call.1} parent=1 // pred_fallthru
      _
    // Predicated region
    $region6: #{tpu_custom_call.1} parent=1 // pred_check
      _
    $region7: #{tpu_custom_call.1} parent=1 // pred_check_branch
      %32 = sbr.rel (0) target = $region9
    $region8: #{tpu_custom_call.1} parent=1 // pred_region
      %s33 = sadd.s32 0, 0
      %p34 = scmp.lt.s32.totalorder %s33, 0
      %s35 = scalar_select %p34, %s33, 0
      %s36 = smul.u32 2, %s35
      %s38 = ssub.s32 256, 256
      %39 = vsyncadd [#allocation6], %s38
      %s40 = smul.addr %s36, 128
      %s41 = scalar_lea.hbm %s1, %s40
      %s42 = sshll.u32 [#allocation5], 4
      %s43 = int_to_ptr.vmem [resolvable:$true] %s42
      %48 = dma.hbm_to_vmem [thread:$0]  %s41, 256, %s43, [#allocation6], 128, 128, 8
    $region9: #{tpu_custom_call.1} parent=1 // pred_fallthru
      _
    // Predicated region
    $region10: #{tpu_custom_call.1} parent=1 // pred_check
      _
    $region11: #{tpu_custom_call.1} parent=1 // pred_check_branch
      %50 = sbr.rel (0) target = $region13
    $region12: #{tpu_custom_call.1} parent=1 // pred_region
      %51 = dma.done [#allocation3], 256
    $region13: #{tpu_custom_call.1} parent=1 // pred_fallthru
      _
    // Predicated region
    $region14: #{tpu_custom_call.1} parent=1 // pred_check
      _
    $region15: #{tpu_custom_call.1} parent=1 // pred_check_branch
      %53 = sbr.rel (0) target = $region17
    $region16: #{tpu_custom_call.1} parent=1 // pred_region
      %54 = dma.done [#allocation6], 256
    $region17: #{tpu_custom_call.1} parent=1 // pred_fallthru
      _
    %s55 = sadd.s32 0, 0
    %p56 = scmp.lt.s32.totalorder %s55, 0
    %s57 = scalar_select %p56, %s55, 0
    %s58 = smul.u32 2, %s57
    %s59 = sadd.s32 0, 0
    %p60 = scmp.lt.s32.totalorder %s59, 0
    %s61 = scalar_select %p60, %s59, 0
    %s62 = smul.u32 2, %s61
    %p63 = scmp.eq.s32.totalorder 0, 0
    // Predicated region
    $region18: #{tpu_custom_call.1} parent=1 // pred_check
      %p64 = pneg %p63
    $region19: #{tpu_custom_call.1} parent=1 // pred_check_branch
      %66 = sbr.rel (%p64) target = $region21
    $region20: #{tpu_custom_call.1} parent=1 // pred_region
      %67 = vst [vmem:[#allocation7] sm:$0x1] 0.0
      %68 = vst [vmem:[#allocation8] sm:$0x1] 0.0
    $region21: #{tpu_custom_call.1} parent=1 // pred_fallthru
      _
    %v69 = vld [vmem:[#allocation2] sm:$0xff]
    %v70 = vld [vmem:[#allocation2 + $0x8] sm:$0xff]
    %v71 = vld [vmem:[#allocation5] sm:$0xff]
    %v72 = vld [vmem:[#allocation5 + $0x8] sm:$0xff]
    %v73 = vmax.f32 %v69, 0.0
    %v74 = vmax.f32 %v70, 0.0
    %v75 = vmul.f32 %v69, %v71
    %v76 = vmul.f32 %v70, %v72
    %v77 = vsub.f32 %v73, %v75
    %v78 = vsub.f32 %v74, %v76
    %v79 = vand.u32 2147483647, %v69
    %v80 = vand.u32 2147483647, %v70
    %v81 = vsub.f32 0.0, %v79
    %v82 = vsub.f32 0.0, %v80
    %v83 = vmul.f32 %v81, 1.442695
    %v84 = vpow.pop %v83
    %v85 = vmul.f32 %v82, 1.442695
    %v86 = vpow.pop %v85
    %v87 = vadd.f32 %v84, 1.0
    %v88 = vlog2.pop %v87
    %v89 = vmul.f32 %v88, 0.6931472
    %v90 = vmul.f32 -0.5, %v84
    %v91 = vadd.f32 %v90, 1.0
    %v92 = vmul.f32 %v91, %v84
    %v93 = vand.u32 2147483647, %v84
    %vm94 = vcmp.lt.f32.partialorder %v93, 0.0004427343
    %v95 = vsel %vm94, %v92, %v89
    %v96 = vadd.f32 %v86, 1.0
    %v97 = vlog2.pop %v96
    %v98 = vmul.f32 %v97, 0.6931472
    %v99 = vmul.f32 -0.5, %v86
    %v100 = vadd.f32 %v99, 1.0
    %v101 = vmul.f32 %v100, %v86
    %v102 = vand.u32 2147483647, %v86
    %vm103 = vcmp.lt.f32.partialorder %v102, 0.0004427343
    %v104 = vsel %vm103, %v101, %v98
    %v105 = vadd.f32 %v77, %v95
    %v106 = vadd.f32 %v78, %v104
    %v107 = vsub.f32 %v69, %v71
    %v108 = vsub.f32 %v70, %v72
    %v109 = vmul.f32 %v107, %v107
    %v110 = vmul.f32 %v108, %v108
    %v111 = vld [vmem:[#allocation7] sm:$0x1]
    %v112 = vadd.f32 %v105, %v106
    %v113 = vrot.slane %v112, 4
    %v114 = vadd.f32 %v112, %v113
    %v115 = vrot.slane %v114, 2
    %v116 = vadd.f32 %v114, %v115
    %v117 = vrot.slane %v116, 1
    %v118 = vadd.f32 %v116, %v117
    %v119 = vadd.f32 %v111, %v118
    %120 = vst [vmem:[#allocation7] sm:$0x1] %v119
    %v121 = vld [vmem:[#allocation8] sm:$0x1]
    %v122 = vadd.f32 %v109, %v110
    %v123 = vrot.slane %v122, 4
    %v124 = vadd.f32 %v122, %v123
    %v125 = vrot.slane %v124, 2
    %v126 = vadd.f32 %v124, %v125
    %v127 = vrot.slane %v126, 1
    %v128 = vadd.f32 %v126, %v127
    %v129 = vadd.f32 %v121, %v128
    %130 = vst [vmem:[#allocation8] sm:$0x1] %v129
    // Predicated region
    $region22: #{tpu_custom_call.1} parent=1 // pred_check
      _
    $region23: #{tpu_custom_call.1} parent=1 // pred_check_branch
      %132 = sbr.rel (0) target = $region25
    $region24: #{tpu_custom_call.1} parent=1 // pred_region
      %s134 = ssub.s32 16, 16
      %135 = vsyncadd [#allocation4], %s134
      %s137 = sshll.u32 [#allocation7], 4
      %s138 = int_to_ptr.vmem [resolvable:$true] %s137
      %140 = dma.vmem_to_hbm [thread:$0]  %s138, 16, %s2, [#allocation4]
    $region25: #{tpu_custom_call.1} parent=1 // pred_fallthru
      _
    // Predicated region
    $region26: #{tpu_custom_call.1} parent=1 // pred_check
      _
    $region27: #{tpu_custom_call.1} parent=1 // pred_check_branch
      %142 = sbr.rel (0) target = $region29
    $region28: #{tpu_custom_call.1} parent=1 // pred_region
      %s144 = ssub.s32 16, 16
      %145 = vsyncadd [#allocation9], %s144
      %s147 = sshll.u32 [#allocation8], 4
      %s148 = int_to_ptr.vmem [resolvable:$true] %s147
      %150 = dma.vmem_to_hbm [thread:$0]  %s148, 16, %s3, [#allocation9]
    $region29: #{tpu_custom_call.1} parent=1 // pred_fallthru
      _
    // Predicated region
    $region30: #{tpu_custom_call.1} parent=1 // pred_check
      _
    $region31: #{tpu_custom_call.1} parent=1 // pred_check_branch
      %152 = sbr.rel (0) target = $region33
    $region32: #{tpu_custom_call.1} parent=1 // pred_region
      %153 = dma.done [#allocation4], 16
    $region33: #{tpu_custom_call.1} parent=1 // pred_fallthru
      _
    // Predicated region
    $region34: #{tpu_custom_call.1} parent=1 // pred_check
      _
    $region35: #{tpu_custom_call.1} parent=1 // pred_check_branch
      %155 = sbr.rel (0) target = $region37
    $region36: #{tpu_custom_call.1} parent=1 // pred_region
      %156 = dma.done [#allocation9], 16
    $region37: #{tpu_custom_call.1} parent=1 // pred_fallthru
      _
    %157 = vsyncpa [#allocation3], 1
    %158 = vsyncpa [#allocation6], 1
    %159 = vsyncpa [#allocation4], 1
    %160 = vsyncpa [#allocation9], 1

</llo_original>
